<compile_context>
chip_gen: v5e
topology: v5e:2x2
jax: 0.10.0
libtpu: 0.0.40
codegen_flags: <defaults>
</compile_context>

<pallas_src>
import functools

import jax
import jax.numpy as jnp
from jax import lax
from jax.experimental import pallas as pl
from jax.experimental.pallas import tpu as pltpu

KSIZE = 7
PAD = 3            # kernel_size=7 -> padding=3
KK = KSIZE * KSIZE


# ---------------------------------------------------------------------------
# Kernels
# ---------------------------------------------------------------------------
def _spatial_attention_mxu_kernel(x_ref, wa_ref, wm_ref, o_ref):
    # x_ref : (C, block_n, HW) VMEM   (C-leading: dense (8,128) tiles)
    # wa_ref: (HW, HW)         VMEM   masked-circulant avg-branch weights (/C folded)
    # wm_ref: (HW, HW)         VMEM   masked-circulant max-branch weights
    # o_ref : (block_n, HW)    VMEM
    x = x_ref[...]
    s = jnp.sum(x.astype(jnp.float32), axis=0)        # channel sum (mean's 1/C in wa)
    mx = jnp.max(x, axis=0).astype(jnp.float32)       # channel max
    acc = jnp.dot(s, wa_ref[...], preferred_element_type=jnp.float32)
    acc = acc + jnp.dot(mx, wm_ref[...], preferred_element_type=jnp.float32)
    o_ref[...] = jax.nn.sigmoid(acc).astype(o_ref.dtype)


def _spatial_attention_roll_kernel(x_ref, w_ref, o_ref, *, H, W):
    # Fallback for large HW (weight matrices would not fit VMEM).
    # x_ref : (C, block_n, HW) VMEM
    # w_ref : (2*49,)          SMEM   [avg-branch w (pre-scaled by 1/C), max-branch w]
    # o_ref : (block_n, HW)    VMEM
    HW = H * W
    x = x_ref[...]
    s = jnp.sum(x.astype(jnp.float32), axis=0)         # (block_n, HW)
    mx = jnp.max(x, axis=0).astype(jnp.float32)        # (block_n, HW)

    # Full-block-shape coordinate maps (built once; no per-tap re-broadcast).
    idx = lax.broadcasted_iota(jnp.int32, s.shape, 1)
    row = idx // W
    col = idx - row * W

    # Separable decomposition: pre-roll by the 7 column offsets once, with the
    # column-validity masks baked into the pre-rolled maps.
    s_cols, m_cols = [], []
    for kw in range(KSIZE):
        dw = kw - PAD
        shift = (-dw) % HW
        a = s if shift == 0 else pltpu.roll(s, shift=shift, axis=1)
        m = mx if shift == 0 else pltpu.roll(mx, shift=shift, axis=1)
        if dw != 0:
            ok = jnp.logical_and(col + dw >= 0, col + dw < W)
            a = jnp.where(ok, a, 0.0)
            m = jnp.where(ok, m, 0.0)
        s_cols.append(a)
        m_cols.append(m)

    # Per-row partials: 14 MACs each, then ONE whole-row roll + row mask.
    # (roll by dh*W commutes with the column masks because W | dh*W.)
    partials = []
    for kh in range(KSIZE):
        dh = kh - PAD
        p = (s_cols[0] * w_ref[kh * KSIZE + 0]
             + m_cols[0] * w_ref[KK + kh * KSIZE + 0])
        for kw in range(1, KSIZE):
            p = (p + s_cols[kw] * w_ref[kh * KSIZE + kw]
                 + m_cols[kw] * w_ref[KK + kh * KSIZE + kw])
        if dh != 0:
            p = pltpu.roll(p, shift=(-dh * W) % HW, axis=1)
            ok = jnp.logical_and(row + dh >= 0, row + dh < H)
            p = jnp.where(ok, p, 0.0)
        partials.append(p)

    # Tree-sum the 7 independent partials (ILP instead of one serial chain).
    while len(partials) > 1:
        nxt = [partials[i] + partials[i + 1] for i in range(0, len(partials) - 1, 2)]
        if len(partials) % 2:
            nxt.append(partials[-1])
        partials = nxt

    o_ref[...] = jax.nn.sigmoid(partials[0]).astype(o_ref.dtype)


# ---------------------------------------------------------------------------
# Wrapper helpers
# ---------------------------------------------------------------------------
def _vmem_capacity_bytes():
    try:
        cap = getattr(pltpu.get_tpu_info(), "vmem_capacity_bytes", None)
        if cap:
            return int(cap)
    except Exception:
        pass
    return 64 << 20   # conservative (v7x per-TC)


def _num_tensorcores():
    # Best-effort: only v7x has 2 TensorCores per device among target chips.
    try:
        d = jax.devices()[0]
        kind = str(getattr(d, "device_kind", "")).lower()
        if "v7" in kind:
            return 2
        nc = getattr(d, "num_cores", None)
        if isinstance(nc, int) and nc > 0:
            return nc
    except Exception:
        pass
    return 1


def _pick_block_n(N, C, HW, itemsize, target_bytes, num_cores):
    """Largest batch block that (a) divides N, (b) is a multiple of 8 (or == N),
    (c) keeps the input block under target_bytes, (d) leaves >= num_cores grid
    steps only on multi-TC parts (grid=(1,) is best on single-TC chips)."""
    cands = sorted({d for d in range(8, N + 1, 8) if N % d == 0} | {N})
    per_n = max(1, C * HW * itemsize)
    cap = max(1, target_bytes // per_n)
    fitting = [d for d in cands if d <= cap] or [min(cands)]
    if num_cores > 1:
        multi = [d for d in fitting if N // d >= num_cores]
        if multi:
            return max(multi)
    return max(fitting)


def _build_circulant_weights(conv_weight, C, H, W):
    """(HW, HW) masked-circulant matrices so the 7x7 'same' conv becomes a
    matmul:  out[n, i] = sum_j avg[n, j] * wa[j, i] + max[n, j] * wm[j, i]."""
    HW = H * W
    w = conv_weight.astype(jnp.float32).reshape(2, KSIZE, KSIZE)
    w_avg = w[0] / C          # fold 1/C of the channel mean into the avg branch
    w_max = w[1]
    i = jnp.arange(HW, dtype=jnp.int32)
    r, q = i // W, i % W
    dh = r[:, None] - r[None, :]          # [input j, output i]
    dw = q[:, None] - q[None, :]
    valid = (jnp.abs(dh) <= PAD) & (jnp.abs(dw) <= PAD)
    kh = jnp.clip(dh + PAD, 0, KSIZE - 1)
    kw = jnp.clip(dw + PAD, 0, KSIZE - 1)
    wa = jnp.where(valid, w_avg[kh, kw], 0.0)
    wm = jnp.where(valid, w_max[kh, kw], 0.0)
    return wa, wm


def spatial_attention(x, conv_weight):
    """x: (N, C, H, W); conv_weight: (1, 2, 7, 7) -> (N, 1, H, W)."""
    N, C, H, W = x.shape
    HW = H * W

    # C-leading, lane-dense layout. NOTE: at W < 128 this transpose/reshape is
    # an XLA relayout copy, not a free view — unavoidable for NCHW input.
    x_cnl = jnp.transpose(x, (1, 0, 2, 3)).reshape(C, N, HW)

    num_cores = _num_tensorcores()
    vmem_cap = _vmem_capacity_bytes()
    # ~4 MiB input blocks on 128 MiB parts, ~2 MiB on 64 MiB (v7x) parts.
    target_bytes = max(1 << 20, min(4 << 20, vmem_cap // 32))
    block_n = _pick_block_n(N, C, HW, x.dtype.itemsize, target_bytes, num_cores)
    grid = (N // block_n,)

    use_mxu = (2 * HW * HW * 4) <= (8 << 20)   # weight matrices fit comfortably

    in_block = C * block_n * HW * x.dtype.itemsize
    out_block = block_n * HW * x.dtype.itemsize
    w_bytes = 2 * HW * HW * 4 if use_mxu else 2 * KK * 4
    need = 4 * (in_block + out_block) + 2 * w_bytes + (4 << 20)
    vmem_limit = int(min(max(16 << 20, vmem_cap - (8 << 20)),
                         max(16 << 20, need)))

    x_spec = pl.BlockSpec((C, block_n, HW), lambda b: (0, b, 0))
    o_spec = pl.BlockSpec((block_n, HW), lambda b: (b, 0))
    cparams = pltpu.CompilerParams(
        dimension_semantics=("parallel",),
        vmem_limit_bytes=vmem_limit,
    )

    if use_mxu:
        wa, wm = _build_circulant_weights(conv_weight, C, H, W)
        out_flat = pl.pallas_call(
            _spatial_attention_mxu_kernel,
            out_shape=jax.ShapeDtypeStruct((N, HW), x.dtype),
            grid=grid,
            in_specs=[
                x_spec,
                pl.BlockSpec((HW, HW), lambda b: (0, 0)),
                pl.BlockSpec((HW, HW), lambda b: (0, 0)),
            ],
            out_specs=o_spec,
            compiler_params=cparams,
        )(x_cnl, wa, wm)
    else:
        w = conv_weight.astype(jnp.float32).reshape(2, KK)
        w_flat = jnp.concatenate([w[0] / C, w[1]])       # (98,)
        kernel = functools.partial(_spatial_attention_roll_kernel, H=H, W=W)
        out_flat = pl.pallas_call(
            kernel,
            out_shape=jax.ShapeDtypeStruct((N, HW), x.dtype),
            grid=grid,
            in_specs=[
                x_spec,
                pl.BlockSpec(memory_space=pltpu.MemorySpace.SMEM),
            ],
            out_specs=o_spec,
            compiler_params=cparams,
        )(x_cnl, w_flat)

    return out_flat.reshape(N, 1, H, W)


# ---------------------------------------------------------------------------
# Reference + test
# ---------------------------------------------------------------------------
def _reference(x, conv_weight):
    avg = jnp.mean(x, axis=1, keepdims=True)
    mx = jnp.max(x, axis=1, keepdims=True)
    cat = jnp.concatenate([avg, mx], axis=1)             # (N,2,H,W)
    y = lax.conv_general_dilated(
        cat, conv_weight.astype(jnp.float32),
        window_strides=(1, 1), padding=((PAD, PAD), (PAD, PAD)),
        dimension_numbers=("NCHW", "OIHW", "NCHW"),
        precision=lax.Precision.HIGHEST)
    return jax.nn.sigmoid(y).astype(x.dtype)


if __name__ == "__main__":
    key = jax.random.PRNGKey(0)
    kx, kw = jax.random.split(key)

    N, C, H, W = 2, 4, 16, 16
    x = jax.random.normal(kx, (N, C, H, W), dtype=jnp.float32)
    # Conv1 weight (out=1, in=2, 7, 7), no bias.
    conv_w = jax.random.normal(kw, (1, 2, KSIZE, KSIZE), dtype=jnp.float32) * 0.1

    out = jax.block_until_ready(spatial_attention(x, conv_w))
    ref = _reference(x, conv_w)

    assert out.shape == (N, 1, H, W)
    err = float(jnp.max(jnp.abs(out - ref)))
    assert jnp.allclose(out, ref, atol=1e-4, rtol=1e-4), f"max abs err = {err}"

    print("KERNEL_OK")
</pallas_src>

<mosaic_0001>
module attributes {stable_mosaic.version = 11 : i64} {
  func.func @_spatial_attention_mxu_kernel(%arg0: i32, %arg1: memref<4x2x256xf32, #tpu.memory_space<vmem>>, %arg2: memref<256x256xf32, #tpu.memory_space<vmem>>, %arg3: memref<256x256xf32, #tpu.memory_space<vmem>>, %arg4: memref<2x256xf32, #tpu.memory_space<vmem>>) attributes {dimension_semantics = [#tpu.dimension_semantics<parallel>], iteration_bounds = array<i64: 1>, scalar_prefetch = 0 : i64, scratch_operands = 0 : i64, tpu.core_type = #tpu.core_type<tc>, window_params = [{transform_indices = @transform_0, window_bounds = array<i64: 4, 2, 256>}, {pipeline_mode = #tpu.pipeline_mode<synchronous>, transform_indices = @transform_1, window_bounds = array<i64: 256, 256>}, {pipeline_mode = #tpu.pipeline_mode<synchronous>, transform_indices = @transform_2, window_bounds = array<i64: 256, 256>}, {transform_indices = @transform_3, window_bounds = array<i64: 2, 256>}]} {
    %c0 = arith.constant 0 : index
    %c0_0 = arith.constant 0 : index
    %c0_1 = arith.constant 0 : index
    %0 = vector.load %arg1[%c0, %c0_0, %c0_1] : memref<4x2x256xf32, #tpu.memory_space<vmem>>, vector<4x2x256xf32>
    %cst = arith.constant dense<0.000000e+00> : vector<2x256xf32>
    %1 = vector.multi_reduction <add>, %0, %cst [0] : vector<4x2x256xf32> to vector<2x256xf32>
    %cst_2 = arith.constant dense<0xFF800000> : vector<2x256xf32>
    %2 = vector.multi_reduction <maximumf>, %0, %cst_2 [0] : vector<4x2x256xf32> to vector<2x256xf32>
    %c0_3 = arith.constant 0 : index
    %c0_4 = arith.constant 0 : index
    %3 = vector.load %arg2[%c0_3, %c0_4] : memref<256x256xf32, #tpu.memory_space<vmem>>, vector<256x256xf32>
    %cst_5 = arith.constant dense<0.000000e+00> : vector<2x256xf32>
    %4 = tpu.matmul %1, %3, %cst_5 {dimension_numbers = #tpu.dot_dimension_numbers<[1], [0], [0], [1], [0, 0, 1, 1], [], []>} : vector<2x256xf32>, vector<256x256xf32>, vector<2x256xf32> -> vector<2x256xf32>
    %c0_6 = arith.constant 0 : index
    %c0_7 = arith.constant 0 : index
    %5 = vector.load %arg3[%c0_6, %c0_7] : memref<256x256xf32, #tpu.memory_space<vmem>>, vector<256x256xf32>
    %cst_8 = arith.constant dense<0.000000e+00> : vector<2x256xf32>
    %6 = tpu.matmul %2, %5, %cst_8 {dimension_numbers = #tpu.dot_dimension_numbers<[1], [0], [0], [1], [0, 0, 1, 1], [], []>} : vector<2x256xf32>, vector<256x256xf32>, vector<2x256xf32> -> vector<2x256xf32>
    %7 = arith.addf %4, %6 : vector<2x256xf32>
    %8 = arith.negf %7 : vector<2x256xf32>
    %9 = math.exp %8 : vector<2x256xf32>
    %cst_9 = arith.constant 1.000000e+00 : f32
    %10 = vector.broadcast %cst_9 : f32 to vector<2x256xf32>
    %11 = arith.addf %10, %9 : vector<2x256xf32>
    %12 = arith.divf %10, %11 : vector<2x256xf32>
    %c0_10 = arith.constant 0 : index
    %c0_11 = arith.constant 0 : index
    %13 = vector.load %arg4[%c0_10, %c0_11] : memref<2x256xf32, #tpu.memory_space<vmem>>, vector<2x256xf32>
    tpu.vector_store %arg4[%c0_10, %c0_11], %12 {strides = array<i32>} : memref<2x256xf32, #tpu.memory_space<vmem>>, vector<2x256xf32>,
    return
  }
  func.func @transform_0(%arg0: i32) -> (i32, i32, i32) {
    %c0_i32 = arith.constant 0 : i32
    %c0_i32_0 = arith.constant 0 : i32
    %c0_i32_1 = arith.constant 0 : i32
    return %c0_i32, %arg0, %c0_i32_0 : i32, i32, i32
  }
  func.func @transform_1(%arg0: i32) -> (i32, i32) {
    %c0_i32 = arith.constant 0 : i32
    %c0_i32_0 = arith.constant 0 : i32
    %c0_i32_1 = arith.constant 0 : i32
    return %c0_i32, %c0_i32_0 : i32, i32
  }
  func.func @transform_2(%arg0: i32) -> (i32, i32) {
    %c0_i32 = arith.constant 0 : i32
    %c0_i32_0 = arith.constant 0 : i32
    %c0_i32_1 = arith.constant 0 : i32
    return %c0_i32, %c0_i32_0 : i32, i32
  }
  func.func @transform_3(%arg0: i32) -> (i32, i32) {
    %c0_i32 = arith.constant 0 : i32
    %c0_i32_0 = arith.constant 0 : i32
    return %arg0, %c0_i32 : i32, i32
  }
}

</mosaic_0001>

<llo_original>
// kernel: tpu_custom_call.1
$region0: #{tpu_custom_call.1}
  #allocation0 [shape = 'u32[]', space=smem, size = 0x4, offset = 0x4, fixed_abs, tag = 'smem constant byte address 0x4 - core index']
  #allocation1 [shape = 'u32[72,128]{1,0:T(1,128)}', space=vmem, size = 0x9000, scoped, tag = 'internal scratch']
  %s0 = inlined_call_operand.hbm [shape: f32[4,2,256], index: 0, kind: input, shape index: {}]
  %s1 = inlined_call_operand.hbm [shape: f32[256,256], index: 1, kind: input, shape index: {}]
  %s2 = inlined_call_operand.hbm [shape: f32[256,256], index: 2, kind: input, shape index: {}]
  %s3 = inlined_call_operand.hbm [shape: f32[2,256], index: 3, kind: output, shape index: {}]
  %s4 = sld [smem:[#allocation0]]
  $region34: #{tpu_custom_call.1} parent=0
    _
  %s6 = ssub.s32 1, %s4
  %s7 = scalar_select 0, %s6, %s4
  $region1: #{tpu_custom_call.1} parent=0
    #allocation2 [shape = 'u8[8192]{0}', space=vmem, size = 0x2000, scoped, tag = 'input window, operand 0, single buffered']
    #allocation3 [shape = 's32[1]{0}', space=sflag, size = 0x4, scoped, tag = 'scoped memory for tpu_custom_call.1']
    #allocation4 [shape = 's32[1]{0}', space=sflag, size = 0x4, scoped, tag = 'scoped memory for tpu_custom_call.1']
    #allocation5 [shape = 'u8[262144]{0}', space=vmem, size = 0x40000, scoped, tag = 'input window, operand 1, single buffered']
    #allocation6 [shape = 's32[1]{0}', space=sflag, size = 0x4, scoped, tag = 'scoped memory for tpu_custom_call.1']
    #allocation7 [shape = 'u8[262144]{0}', space=vmem, size = 0x40000, scoped, tag = 'input window, operand 2, single buffered']
    #allocation8 [shape = 'u8[2048]{0}', space=vmem, size = 0x800, scoped, tag = 'output window, operand 0, single buffered']
    %8 = vsyncpa [#allocation3], 0
    %9 = vsyncpa [#allocation6], 0
    %10 = vsyncpa [#allocation4], 0
    // Predicated region
    $region2: #{tpu_custom_call.1} parent=1 // pred_check
      _
    $region3: #{tpu_custom_call.1} parent=1 // pred_check_branch
      %12 = sbr.rel (0) target = $region5
    $region4: #{tpu_custom_call.1} parent=1 // pred_region
      %14 = vsyncadd [#allocation3], 0
      %s15 = sshll.u32 %s0, 4
      %s16 = int_to_ptr.hbm [resolvable:$true] %s15
      %s17 = sshll.u32 [#allocation2], 4
      %s18 = int_to_ptr.vmem [resolvable:$true] %s17
      %23 = dma.hbm_to_vmem [thread:$0]  %s16, 256, %s18, [#allocation3], 64, 64, 4
    $region5: #{tpu_custom_call.1} parent=1 // pred_fallthru
      _
    // Predicated region
    $region6: #{tpu_custom_call.1} parent=1 // pred_check
      _
    $region7: #{tpu_custom_call.1} parent=1 // pred_check_branch
      %25 = sbr.rel (0) target = $region9
    $region8: #{tpu_custom_call.1} parent=1 // pred_region
      %27 = vsyncadd [#allocation6], 0
      %s28 = sshll.u32 %s1, 4
      %s29 = int_to_ptr.hbm [resolvable:$true] %s28
      %s30 = sshll.u32 [#allocation5], 4
      %s31 = int_to_ptr.vmem [resolvable:$true] %s30
      %36 = dma.hbm_to_vmem [thread:$0]  %s29, 8192, %s31, [#allocation6], 256, 256, 16
    $region9: #{tpu_custom_call.1} parent=1 // pred_fallthru
      _
    // Predicated region
    $region10: #{tpu_custom_call.1} parent=1 // pred_check
      _
    $region11: #{tpu_custom_call.1} parent=1 // pred_check_branch
      %38 = sbr.rel (0) target = $region13
    $region12: #{tpu_custom_call.1} parent=1 // pred_region
      %40 = vsyncadd [#allocation6], 0
      %s41 = sshll.u32 %s2, 4
      %s42 = int_to_ptr.hbm [resolvable:$true] %s41
      %s43 = sshll.u32 [#allocation7], 4
      %s44 = int_to_ptr.vmem [resolvable:$true] %s43
      %49 = dma.hbm_to_vmem [thread:$0]  %s42, 8192, %s44, [#allocation6], 256, 256, 16
    $region13: #{tpu_custom_call.1} parent=1 // pred_fallthru
      _
    // Predicated region
    $region14: #{tpu_custom_call.1} parent=1 // pred_check
      _
    $region15: #{tpu_custom_call.1} parent=1 // pred_check_branch
      %51 = sbr.rel (0) target = $region17
    $region16: #{tpu_custom_call.1} parent=1 // pred_region
      %53 = dma.done [#allocation3], 256
    $region17: #{tpu_custom_call.1} parent=1 // pred_fallthru
      _
    // Predicated region
    $region18: #{tpu_custom_call.1} parent=1 // pred_check
      _
    $region19: #{tpu_custom_call.1} parent=1 // pred_check_branch
      %55 = sbr.rel (0) target = $region21
    $region20: #{tpu_custom_call.1} parent=1 // pred_region
      %57 = dma.done [#allocation6], 8192
    $region21: #{tpu_custom_call.1} parent=1 // pred_fallthru
      _
    // Predicated region
    $region22: #{tpu_custom_call.1} parent=1 // pred_check
      _
    $region23: #{tpu_custom_call.1} parent=1 // pred_check_branch
      %59 = sbr.rel (0) target = $region25
    $region24: #{tpu_custom_call.1} parent=1 // pred_region
      %61 = dma.done [#allocation6], 8192
    $region25: #{tpu_custom_call.1} parent=1 // pred_fallthru
      _
    %v62 = vld [vmem:[#allocation2] sm:$0xf]
    %v63 = vld [vmem:[#allocation2 + $0x4] sm:$0xf]
    %v64 = vld [vmem:[#allocation2 + $0x8] sm:$0xf]
    %v65 = vld [vmem:[#allocation2 + $0xc] sm:$0xf]
    %70 = vst [vmem:[#allocation1] ss:$4 sm:$0xff] %v62
    %v71 = vld.sshfl [vmem:[#allocation1] sm:$0xff pattern:$0x73625140]
    %v72 = vld.sshfl [vmem:[#allocation1 + $0x8] sm:$0xff pattern:$0x73625140]
    %s73 = scalar_lea.vmem [#allocation1], 32
    %74 = vst [vmem:[%s73] ss:$4 sm:$0xff] %v63
    %v75 = vld.sshfl [vmem:[#allocation1 + $0x20] sm:$0xff pattern:$0x73625140]
    %v76 = vld.sshfl [vmem:[#allocation1 + $0x28] sm:$0xff pattern:$0x73625140]
    %77 = vst [vmem:[#allocation1] ss:$4 sm:$0xff] %v64
    %v78 = vld.sshfl [vmem:[#allocation1] sm:$0xff pattern:$0x73625140]
    %v79 = vld.sshfl [vmem:[#allocation1 + $0x8] sm:$0xff pattern:$0x73625140]
    %80 = vst [vmem:[%s73] ss:$4 sm:$0xff] %v65
    %v81 = vld.sshfl [vmem:[#allocation1 + $0x20] sm:$0xff pattern:$0x73625140]
    %v82 = vld.sshfl [vmem:[#allocation1 + $0x28] sm:$0xff pattern:$0x73625140]
    %vm91 = vcmask 1041408
    %v92 = vsel %vm91, %v71, 0.0
    %v93 = vsel %vm91, %v75, 0.0
    %v94 = vadd.f32 %v92, %v93
    %v95 = vsel %vm91, %v78, 0.0
    %v96 = vadd.f32 %v94, %v95
    %v97 = vsel %vm91, %v81, 0.0
    %v98 = vadd.f32 %v96, %v97
    %v99 = vsel %vm91, %v72, 0.0
    %v100 = vsel %vm91, %v76, 0.0
    %v101 = vadd.f32 %v99, %v100
    %v102 = vsel %vm91, %v79, 0.0
    %v103 = vadd.f32 %v101, %v102
    %v104 = vsel %vm91, %v82, 0.0
    %v105 = vadd.f32 %v103, %v104
    %vm106 = vcmask 1043458
    %vm107 = vmor %vm106, %vm91
    %v108 = vsel %vm107, %v62, -inf
    %v109 = vsel %vm107, %v63, -inf
    %v110 = vsel %vm107, %v64, -inf
    %v111 = vsel %vm107, %v65, -inf
    %v112 = vmax.f32 %v108, %v109
    %v113 = vmax.f32 %v110, %v111
    %v114 = vmax.f32 %v112, %v113
    %v115 = vld [vmem:[#allocation5] sm:$0xff]
    %v116 = vld [vmem:[#allocation5 + $0x8] sm:$0xff]
    %v117 = vld [vmem:[#allocation5 + $0x10] sm:$0xff]
    %v118 = vld [vmem:[#allocation5 + $0x18] sm:$0xff]
    %v119 = vld [vmem:[#allocation5 + $0x20] sm:$0xff]
    %v120 = vld [vmem:[#allocation5 + $0x28] sm:$0xff]
    %v121 = vld [vmem:[#allocation5 + $0x30] sm:$0xff]
    %v122 = vld [vmem:[#allocation5 + $0x38] sm:$0xff]
    %v123 = vld [vmem:[#allocation5 + $0x40] sm:$0xff]
    %v124 = vld [vmem:[#allocation5 + $0x48] sm:$0xff]
    %v125 = vld [vmem:[#allocation5 + $0x50] sm:$0xff]
    %v126 = vld [vmem:[#allocation5 + $0x58] sm:$0xff]
    %v127 = vld [vmem:[#allocation5 + $0x60] sm:$0xff]
    %v128 = vld [vmem:[#allocation5 + $0x68] sm:$0xff]
    %v129 = vld [vmem:[#allocation5 + $0x70] sm:$0xff]
    %v130 = vld [vmem:[#allocation5 + $0x78] sm:$0xff]
    %v131 = vld [vmem:[#allocation5 + $0x80] sm:$0xff]
    %v132 = vld [vmem:[#allocation5 + $0x88] sm:$0xff]
    %v133 = vld [vmem:[#allocation5 + $0x90] sm:$0xff]
    %v134 = vld [vmem:[#allocation5 + $0x98] sm:$0xff]
    %v135 = vld [vmem:[#allocation5 + $0xa0] sm:$0xff]
    %v136 = vld [vmem:[#allocation5 + $0xa8] sm:$0xff]
    %v137 = vld [vmem:[#allocation5 + $0xb0] sm:$0xff]
    %v138 = vld [vmem:[#allocation5 + $0xb8] sm:$0xff]
    %v139 = vld [vmem:[#allocation5 + $0xc0] sm:$0xff]
    %v140 = vld [vmem:[#allocation5 + $0xc8] sm:$0xff]
    %v141 = vld [vmem:[#allocation5 + $0xd0] sm:$0xff]
    %v142 = vld [vmem:[#allocation5 + $0xd8] sm:$0xff]
    %v143 = vld [vmem:[#allocation5 + $0xe0] sm:$0xff]
    %v144 = vld [vmem:[#allocation5 + $0xe8] sm:$0xff]
    %v145 = vld [vmem:[#allocation5 + $0xf0] sm:$0xff]
    %v146 = vld [vmem:[#allocation5 + $0xf8] sm:$0xff]
    %v147 = vld [vmem:[#allocation5 + $0x100] sm:$0xff]
    %v148 = vld [vmem:[#allocation5 + $0x108] sm:$0xff]
    %v149 = vld [vmem:[#allocation5 + $0x110] sm:$0xff]
    %v150 = vld [vmem:[#allocation5 + $0x118] sm:$0xff]
    %v151 = vld [vmem:[#allocation5 + $0x120] sm:$0xff]
    %v152 = vld [vmem:[#allocation5 + $0x128] sm:$0xff]
    %v153 = vld [vmem:[#allocation5 + $0x130] sm:$0xff]
    %v154 = vld [vmem:[#allocation5 + $0x138] sm:$0xff]
    %v155 = vld [vmem:[#allocation5 + $0x140] sm:$0xff]
    %v156 = vld [vmem:[#allocation5 + $0x148] sm:$0xff]
    %v157 = vld [vmem:[#allocation5 + $0x150] sm:$0xff]
    %v158 = vld [vmem:[#allocation5 + $0x158] sm:$0xff]
    %v159 = vld [vmem:[#allocation5 + $0x160] sm:$0xff]
    %v160 = vld [vmem:[#allocation5 + $0x168] sm:$0xff]
    %v161 = vld [vmem:[#allocation5 + $0x170] sm:$0xff]
    %v162 = vld [vmem:[#allocation5 + $0x178] sm:$0xff]
    %v163 = vld [vmem:[#allocation5 + $0x180] sm:$0xff]
    %v164 = vld [vmem:[#allocation5 + $0x188] sm:$0xff]
    %v165 = vld [vmem:[#allocation5 + $0x190] sm:$0xff]
    %v166 = vld [vmem:[#allocation5 + $0x198] sm:$0xff]
    %v167 = vld [vmem:[#allocation5 + $0x1a0] sm:$0xff]
    %v168 = vld [vmem:[#allocation5 + $0x1a8] sm:$0xff]
    %v169 = vld [vmem:[#allocation5 + $0x1b0] sm:$0xff]
    %v170 = vld [vmem:[#allocation5 + $0x1b8] sm:$0xff]
    %v171 = vld [vmem:[#allocation5 + $0x1c0] sm:$0xff]
    %v172 = vld [vmem:[#allocation5 + $0x1c8] sm:$0xff]
    %v173 = vld [vmem:[#allocation5 + $0x1d0] sm:$0xff]
    %v174 = vld [vmem:[#allocation5 + $0x1d8] sm:$0xff]
    %v175 = vld [vmem:[#allocation5 + $0x1e0] sm:$0xff]
    %v176 = vld [vmem:[#allocation5 + $0x1e8] sm:$0xff]
    %v177 = vld [vmem:[#allocation5 + $0x1f0] sm:$0xff]
    %v178 = vld [vmem:[#allocation5 + $0x1f8] sm:$0xff]
    %v179 = vld [vmem:[#allocation7] sm:$0xff]
    %v180 = vld [vmem:[#allocation7 + $0x8] sm:$0xff]
    %v181 = vld [vmem:[#allocation7 + $0x10] sm:$0xff]
    %v182 = vld [vmem:[#allocation7 + $0x18] sm:$0xff]
    %v183 = vld [vmem:[#allocation7 + $0x20] sm:$0xff]
    %v184 = vld [vmem:[#allocation7 + $0x28] sm:$0xff]
    %v185 = vld [vmem:[#allocation7 + $0x30] sm:$0xff]
    %v186 = vld [vmem:[#allocation7 + $0x38] sm:$0xff]
    %v187 = vld [vmem:[#allocation7 + $0x40] sm:$0xff]
    %v188 = vld [vmem:[#allocation7 + $0x48] sm:$0xff]
    %v189 = vld [vmem:[#allocation7 + $0x50] sm:$0xff]
    %v190 = vld [vmem:[#allocation7 + $0x58] sm:$0xff]
    %v191 = vld [vmem:[#allocation7 + $0x60] sm:$0xff]
    %v192 = vld [vmem:[#allocation7 + $0x68] sm:$0xff]
    %v193 = vld [vmem:[#allocation7 + $0x70] sm:$0xff]
    %v194 = vld [vmem:[#allocation7 + $0x78] sm:$0xff]
    %v195 = vld [vmem:[#allocation7 + $0x80] sm:$0xff]
    %v196 = vld [vmem:[#allocation7 + $0x88] sm:$0xff]
    %v197 = vld [vmem:[#allocation7 + $0x90] sm:$0xff]
    %v198 = vld [vmem:[#allocation7 + $0x98] sm:$0xff]
    %v199 = vld [vmem:[#allocation7 + $0xa0] sm:$0xff]
    %v200 = vld [vmem:[#allocation7 + $0xa8] sm:$0xff]
    %v201 = vld [vmem:[#allocation7 + $0xb0] sm:$0xff]
    %v202 = vld [vmem:[#allocation7 + $0xb8] sm:$0xff]
    %v203 = vld [vmem:[#allocation7 + $0xc0] sm:$0xff]
    %v204 = vld [vmem:[#allocation7 + $0xc8] sm:$0xff]
    %v205 = vld [vmem:[#allocation7 + $0xd0] sm:$0xff]
    %v206 = vld [vmem:[#allocation7 + $0xd8] sm:$0xff]
    %v207 = vld [vmem:[#allocation7 + $0xe0] sm:$0xff]
    %v208 = vld [vmem:[#allocation7 + $0xe8] sm:$0xff]
    %v209 = vld [vmem:[#allocation7 + $0xf0] sm:$0xff]
    %v210 = vld [vmem:[#allocation7 + $0xf8] sm:$0xff]
    %v211 = vld [vmem:[#allocation7 + $0x100] sm:$0xff]
    %v212 = vld [vmem:[#allocation7 + $0x108] sm:$0xff]
    %v213 = vld [vmem:[#allocation7 + $0x110] sm:$0xff]
    %v214 = vld [vmem:[#allocation7 + $0x118] sm:$0xff]
    %v215 = vld [vmem:[#allocation7 + $0x120] sm:$0xff]
    %v216 = vld [vmem:[#allocation7 + $0x128] sm:$0xff]
    %v217 = vld [vmem:[#allocation7 + $0x130] sm:$0xff]
    %v218 = vld [vmem:[#allocation7 + $0x138] sm:$0xff]
    %v219 = vld [vmem:[#allocation7 + $0x140] sm:$0xff]
    %v220 = vld [vmem:[#allocation7 + $0x148] sm:$0xff]
    %v221 = vld [vmem:[#allocation7 + $0x150] sm:$0xff]
    %v222 = vld [vmem:[#allocation7 + $0x158] sm:$0xff]
    %v223 = vld [vmem:[#allocation7 + $0x160] sm:$0xff]
    %v224 = vld [vmem:[#allocation7 + $0x168] sm:$0xff]
    %v225 = vld [vmem:[#allocation7 + $0x170] sm:$0xff]
    %v226 = vld [vmem:[#allocation7 + $0x178] sm:$0xff]
    %v227 = vld [vmem:[#allocation7 + $0x180] sm:$0xff]
    %v228 = vld [vmem:[#allocation7 + $0x188] sm:$0xff]
    %v229 = vld [vmem:[#allocation7 + $0x190] sm:$0xff]
    %v230 = vld [vmem:[#allocation7 + $0x198] sm:$0xff]
    %v231 = vld [vmem:[#allocation7 + $0x1a0] sm:$0xff]
    %v232 = vld [vmem:[#allocation7 + $0x1a8] sm:$0xff]
    %v233 = vld [vmem:[#allocation7 + $0x1b0] sm:$0xff]
    %v234 = vld [vmem:[#allocation7 + $0x1b8] sm:$0xff]
    %v235 = vld [vmem:[#allocation7 + $0x1c0] sm:$0xff]
    %v236 = vld [vmem:[#allocation7 + $0x1c8] sm:$0xff]
    %v237 = vld [vmem:[#allocation7 + $0x1d0] sm:$0xff]
    %v238 = vld [vmem:[#allocation7 + $0x1d8] sm:$0xff]
    %v239 = vld [vmem:[#allocation7 + $0x1e0] sm:$0xff]
    %v240 = vld [vmem:[#allocation7 + $0x1e8] sm:$0xff]
    %v241 = vld [vmem:[#allocation7 + $0x1f0] sm:$0xff]
    %v242 = vld [vmem:[#allocation7 + $0x1f8] sm:$0xff]
    %244 = vst [vmem:[#allocation1] ss:$4 sm:$0xff] %v114
    %v245 = vld.sshfl [vmem:[#allocation1] sm:$0xff pattern:$0x73625140]
    %v246 = vld.sshfl [vmem:[#allocation1 + $0x8] sm:$0xff pattern:$0x73625140]
    %249 = vmatpush.msra.mxu0 %v209
    %250 = vmatpush.msra.mxu0 %v207
    %251 = vmatpush.msra.mxu0 %v205
    %252 = vmatpush.msra.mxu0 %v203
    %253 = vmatpush.msra.mxu0 %v201
    %254 = vmatpush.msra.mxu0 %v199
    %255 = vmatpush.msra.mxu0 %v197
    %256 = vmatpush.msra.mxu0 %v195
    %257 = vmatpush.msra.mxu0 %v193
    %258 = vmatpush.msra.mxu0 %v191
    %259 = vmatpush.msra.mxu0 %v189
    %260 = vmatpush.msra.mxu0 %v187
    %261 = vmatpush.msra.mxu0 %v185
    %262 = vmatpush.msra.mxu0 %v183
    %263 = vmatpush.msra.mxu0 %v181
    %264 = vmatpush.msra.mxu0 %v179
    %265 = vmatmul.f32.gmra.mxu0 %v245
    %v266 = vpop.f32.mrf.mxu0
    %v267 = vadd.f32 0.0, %v266
    %268 = vdwg.mxu0
    %269 = vmatpush.msra.mxu0 %v241
    %270 = vmatpush.msra.mxu0 %v239
    %271 = vmatpush.msra.mxu0 %v237
    %272 = vmatpush.msra.mxu0 %v235
    %273 = vmatpush.msra.mxu0 %v233
    %274 = vmatpush.msra.mxu0 %v231
    %275 = vmatpush.msra.mxu0 %v229
    %276 = vmatpush.msra.mxu0 %v227
    %277 = vmatpush.msra.mxu0 %v225
    %278 = vmatpush.msra.mxu0 %v223
    %279 = vmatpush.msra.mxu0 %v221
    %280 = vmatpush.msra.mxu0 %v219
    %281 = vmatpush.msra.mxu0 %v217
    %282 = vmatpush.msra.mxu0 %v215
    %283 = vmatpush.msra.mxu0 %v213
    %284 = vmatpush.msra.mxu0 %v211
    %285 = vmatmul.f32.gmra.mxu0 %v246
    %v286 = vpop.f32.mrf.mxu0
    %v287 = vadd.f32 %v267, %v286
    %288 = vdwg.mxu0
    %289 = vmatpush.msra.mxu0 %v210
    %290 = vmatpush.msra.mxu0 %v208
    %291 = vmatpush.msra.mxu0 %v206
    %292 = vmatpush.msra.mxu0 %v204
    %293 = vmatpush.msra.mxu0 %v202
    %294 = vmatpush.msra.mxu0 %v200
    %295 = vmatpush.msra.mxu0 %v198
    %296 = vmatpush.msra.mxu0 %v196
    %297 = vmatpush.msra.mxu0 %v194
    %298 = vmatpush.msra.mxu0 %v192
    %299 = vmatpush.msra.mxu0 %v190
    %300 = vmatpush.msra.mxu0 %v188
    %301 = vmatpush.msra.mxu0 %v186
    %302 = vmatpush.msra.mxu0 %v184
    %303 = vmatpush.msra.mxu0 %v182
    %304 = vmatpush.msra.mxu0 %v180
    %305 = vmatmul.f32.gmra.mxu0 %v245
    %v306 = vpop.f32.mrf.mxu0
    %v307 = vadd.f32 0.0, %v306
    %308 = vdwg.mxu0
    %309 = vmatpush.msra.mxu0 %v242
    %310 = vmatpush.msra.mxu0 %v240
    %311 = vmatpush.msra.mxu0 %v238
    %312 = vmatpush.msra.mxu0 %v236
    %313 = vmatpush.msra.mxu0 %v234
    %314 = vmatpush.msra.mxu0 %v232
    %315 = vmatpush.msra.mxu0 %v230
    %316 = vmatpush.msra.mxu0 %v228
    %317 = vmatpush.msra.mxu0 %v226
    %318 = vmatpush.msra.mxu0 %v224
    %319 = vmatpush.msra.mxu0 %v222
    %320 = vmatpush.msra.mxu0 %v220
    %321 = vmatpush.msra.mxu0 %v218
    %322 = vmatpush.msra.mxu0 %v216
    %323 = vmatpush.msra.mxu0 %v214
    %324 = vmatpush.msra.mxu0 %v212
    %325 = vmatmul.f32.gmra.mxu0 %v246
    %v326 = vpop.f32.mrf.mxu0
    %v327 = vadd.f32 %v307, %v326
    %328 = vdwg.mxu0
    %329 = vmatpush.msra.mxu0 %v145
    %330 = vmatpush.msra.mxu0 %v143
    %331 = vmatpush.msra.mxu0 %v141
    %332 = vmatpush.msra.mxu0 %v139
    %333 = vmatpush.msra.mxu0 %v137
    %334 = vmatpush.msra.mxu0 %v135
    %335 = vmatpush.msra.mxu0 %v133
    %336 = vmatpush.msra.mxu0 %v131
    %337 = vmatpush.msra.mxu0 %v129
    %338 = vmatpush.msra.mxu0 %v127
    %339 = vmatpush.msra.mxu0 %v125
    %340 = vmatpush.msra.mxu0 %v123
    %341 = vmatpush.msra.mxu0 %v121
    %342 = vmatpush.msra.mxu0 %v119
    %343 = vmatpush.msra.mxu0 %v117
    %344 = vmatpush.msra.mxu0 %v115
    %345 = vmatmul.f32.gmra.mxu0 %v98
    %v346 = vpop.f32.mrf.mxu0
    %v347 = vadd.f32 %v287, %v346
    %348 = vdwg.mxu0
    %349 = vmatpush.msra.mxu0 %v177
    %350 = vmatpush.msra.mxu0 %v175
    %351 = vmatpush.msra.mxu0 %v173
    %352 = vmatpush.msra.mxu0 %v171
    %353 = vmatpush.msra.mxu0 %v169
    %354 = vmatpush.msra.mxu0 %v167
    %355 = vmatpush.msra.mxu0 %v165
    %356 = vmatpush.msra.mxu0 %v163
    %357 = vmatpush.msra.mxu0 %v161
    %358 = vmatpush.msra.mxu0 %v159
    %359 = vmatpush.msra.mxu0 %v157
    %360 = vmatpush.msra.mxu0 %v155
    %361 = vmatpush.msra.mxu0 %v153
    %362 = vmatpush.msra.mxu0 %v151
    %363 = vmatpush.msra.mxu0 %v149
    %364 = vmatpush.msra.mxu0 %v147
    %365 = vmatmul.f32.gmra.mxu0 %v105
    %v366 = vpop.f32.mrf.mxu0
    %v367 = vadd.f32 %v347, %v366
    %368 = vdwg.mxu0
    %369 = vmatpush.msra.mxu0 %v146
    %370 = vmatpush.msra.mxu0 %v144
    %371 = vmatpush.msra.mxu0 %v142
    %372 = vmatpush.msra.mxu0 %v140
    %373 = vmatpush.msra.mxu0 %v138
    %374 = vmatpush.msra.mxu0 %v136
    %375 = vmatpush.msra.mxu0 %v134
    %376 = vmatpush.msra.mxu0 %v132
    %377 = vmatpush.msra.mxu0 %v130
    %378 = vmatpush.msra.mxu0 %v128
    %379 = vmatpush.msra.mxu0 %v126
    %380 = vmatpush.msra.mxu0 %v124
    %381 = vmatpush.msra.mxu0 %v122
    %382 = vmatpush.msra.mxu0 %v120
    %383 = vmatpush.msra.mxu0 %v118
    %384 = vmatpush.msra.mxu0 %v116
    %385 = vmatmul.f32.gmra.mxu0 %v98
    %v386 = vpop.f32.mrf.mxu0
    %v387 = vadd.f32 %v327, %v386
    %388 = vdwg.mxu0
    %389 = vmatpush.msra.mxu0 %v178
    %390 = vmatpush.msra.mxu0 %v176
    %391 = vmatpush.msra.mxu0 %v174
    %392 = vmatpush.msra.mxu0 %v172
    %393 = vmatpush.msra.mxu0 %v170
    %394 = vmatpush.msra.mxu0 %v168
    %395 = vmatpush.msra.mxu0 %v166
    %396 = vmatpush.msra.mxu0 %v164
    %397 = vmatpush.msra.mxu0 %v162
    %398 = vmatpush.msra.mxu0 %v160
    %399 = vmatpush.msra.mxu0 %v158
    %400 = vmatpush.msra.mxu0 %v156
    %401 = vmatpush.msra.mxu0 %v154
    %402 = vmatpush.msra.mxu0 %v152
    %403 = vmatpush.msra.mxu0 %v150
    %404 = vmatpush.msra.mxu0 %v148
    %405 = vmatmul.f32.gmra.mxu0 %v105
    %v406 = vpop.f32.mrf.mxu0
    %v407 = vadd.f32 %v387, %v406
    %408 = vdwg.mxu0
    %v409 = vxor.u32 %v367, 2147483648
    %v410 = vxor.u32 %v407, 2147483648
    %v411 = vmul.f32 %v409, 1.442695
    %v412 = vpow.pop %v411
    %v413 = vmul.f32 %v410, 1.442695
    %v414 = vpow.pop %v413
    %v415 = vadd.f32 %v412, 1.0
    %v416 = vadd.f32 %v414, 1.0
    %v417 = vrcp.pop %v415
    %v418 = vmul.f32 %v415, %v417
    %v419 = vsub.f32 1.0, %v418
    %v420 = vmul.f32 %v417, %v419
    %v421 = vadd.f32 %v417, %v420
    %vm422 = vweird.f32 %v415
    %vm423 = vweird.f32 %v417
    %vm424 = vmor %vm422, %vm423
    %v425 = vsel %vm424, %v417, %v421
    %v426 = vand.u32 2147483647, %v415
    %vm427 = vcmp.eq.f32.partialorder %v426, 8.507059e+37
    %v428 = vand.u32 %v415, 2147483648
    %v429 = vor.u32 1.1754944e-38, %v428
    %v430 = vsel %vm427, %v429, %v425
    %v431 = vmul.f32 1.0, %v430
    %v432 = vrcp.pop %v416
    %v433 = vmul.f32 %v416, %v432
    %v434 = vsub.f32 1.0, %v433
    %v435 = vmul.f32 %v432, %v434
    %v436 = vadd.f32 %v432, %v435
    %vm437 = vweird.f32 %v416
    %vm438 = vweird.f32 %v432
    %vm439 = vmor %vm437, %vm438
    %v440 = vsel %vm439, %v432, %v436
    %v441 = vand.u32 2147483647, %v416
    %vm442 = vcmp.eq.f32.partialorder %v441, 8.507059e+37
    %v443 = vand.u32 %v416, 2147483648
    %v444 = vor.u32 1.1754944e-38, %v443
    %v445 = vsel %vm442, %v444, %v440
    %v446 = vmul.f32 1.0, %v445
    %v449 = vrot.slane %v446, 6
    %v450 = vsel %vm91, %v431, %v449
    %452 = vst [vmem:[#allocation8] sm:$0xf] %v450
    // Predicated region
    $region26: #{tpu_custom_call.1} parent=1 // pred_check
      _
    $region27: #{tpu_custom_call.1} parent=1 // pred_check_branch
      %454 = sbr.rel (0) target = $region29
    $region28: #{tpu_custom_call.1} parent=1 // pred_region
      %456 = vsyncadd [#allocation4], 0
      %s458 = sshll.u32 [#allocation8], 4
      %s459 = int_to_ptr.vmem [resolvable:$true] %s458
      %s460 = sshll.u32 %s3, 4
      %s461 = int_to_ptr.hbm [resolvable:$true] %s460
      %463 = dma.vmem_to_hbm [thread:$0]  %s459, 64, %s461, [#allocation4]
    $region29: #{tpu_custom_call.1} parent=1 // pred_fallthru
      _
    // Predicated region
    $region30: #{tpu_custom_call.1} parent=1 // pred_check
      _
    $region31: #{tpu_custom_call.1} parent=1 // pred_check_branch
      %465 = sbr.rel (0) target = $region33
    $region32: #{tpu_custom_call.1} parent=1 // pred_region
      %467 = dma.done [#allocation4], 64
    $region33: #{tpu_custom_call.1} parent=1 // pred_fallthru
      _
    %468 = vsyncpa [#allocation3], 1
    %469 = vsyncpa [#allocation6], 1
    %470 = vsyncpa [#allocation4], 1

</llo_original>
